<compile_context>
chip_gen: v7x
topology: tpu7x:2x2x1
jax: 0.10.0
libtpu: 0.0.40
codegen_flags: <defaults>
</compile_context>

<pallas_src>
import jax
import jax.numpy as jnp
from jax.experimental import pallas as pl
from jax.experimental.pallas import tpu as pltpu

_LANE = 128


def _round_up(n, m):
    return ((n + m - 1) // m) * m


def _choose_tile_b(B, tile_b):
    """Lane-dense batch tile: multiple of 128, >=2 grid steps when B allows it."""
    tile = _round_up(max(int(tile_b), _LANE), _LANE)
    if B > _LANE:
        # Cap so both v7x TensorCores get at least one tile each.
        tile = min(tile, _round_up((B + 1) // 2, _LANE))
    tile = min(tile, _round_up(B, _LANE))
    return max(tile, _LANE)


def simplenet_kernel(x_ref,
                     w1_ref, b1_ref,
                     w2_ref, b2_ref,
                     w3_ref, b3_ref,
                     w4_ref, b4_ref,
                     o_ref):
    """Fused MLP forward for one batch tile (batch on the lane axis).

    x_ref:  [32, TILE_B]  bf16   (x^T tile)
    wN_ref: [out, in]     f32    (PyTorch layout, used directly as matmul LHS)
    bN_ref: [out, 1]      f32
    o_ref:  [1, TILE_B]   f32
    """
    # Upcast once; all element-wise math stays f32 (v5e VPU/EUP have no bf16).
    x = x_ref[...].astype(jnp.float32)                       # [32, TILE_B]

    # Linear(32 -> 64) + ReLU  (dropout afterwards is identity in eval mode)
    h = jnp.dot(w1_ref[...], x, preferred_element_type=jnp.float32) + b1_ref[...]
    h = jnp.maximum(h, 0.0)                                  # [64, TILE_B]

    # Linear(64 -> 32) + ELU(alpha=1.0); exp arg clamped so the unselected
    # branch never overflows.
    h = jnp.dot(w2_ref[...], h, preferred_element_type=jnp.float32) + b2_ref[...]
    h = jnp.where(h > 0, h, jnp.exp(jnp.minimum(h, 0.0)) - 1.0)   # [32, TILE_B]

    # Linear(32 -> 16) + LeakyReLU(0.01)
    h = jnp.dot(w3_ref[...], h, preferred_element_type=jnp.float32) + b3_ref[...]
    h = jnp.where(h > 0, h, 0.01 * h)                        # [16, TILE_B]

    # Linear(16 -> 1) as VPU multiply + sublane reduction (exact [1, TILE_B],
    # no MXU/EUP work on padded columns), then sigmoid via a single tanh.
    z = jnp.sum(h * w4_ref[...], axis=0, keepdims=True) + b4_ref[...]   # [1, TILE_B]
    o_ref[...] = (0.5 * (jnp.tanh(0.5 * z) + 1.0)).astype(o_ref.dtype)


def simplenet_forward(x, params, *, tile_b=2048):
    """x: [B, 32] float32.  params: list of (W [out,in], b [out]) PyTorch-style.

    Returns [B, 1] float32 (matches SimpleNet forward in eval mode)."""
    B, F = x.shape
    (w1, b1), (w2, b2), (w3, b3), (w4, b4) = params
    out_dim = w4.shape[0]                                     # 1

    # Layout work done once in the wrapper (never per grid step):
    #   * transpose + bf16-cast the activation stream (batch -> lane axis)
    #   * weights stay [out, in] (used directly as matmul LHS)
    #   * biases reshaped to [out, 1]; final weight transposed to [in, 1]
    #     for the multiply-reduce last layer.
    x_t = jnp.asarray(x, jnp.float32).T.astype(jnp.bfloat16)  # [32, B]
    flat_args = [
        jnp.asarray(w1, jnp.float32), jnp.asarray(b1, jnp.float32)[:, None],
        jnp.asarray(w2, jnp.float32), jnp.asarray(b2, jnp.float32)[:, None],
        jnp.asarray(w3, jnp.float32), jnp.asarray(b3, jnp.float32)[:, None],
        jnp.asarray(w4, jnp.float32).T, jnp.asarray(b4, jnp.float32)[:, None],
    ]

    tile_b = _choose_tile_b(B, tile_b)
    grid = (pl.cdiv(B, tile_b),)

    x_spec = pl.BlockSpec((F, tile_b), lambda i: (0, i))
    # Constant index_map -> weights/biases stay resident in VMEM across steps.
    param_specs = [pl.BlockSpec(a.shape, lambda i: (0, 0)) for a in flat_args]
    out_spec = pl.BlockSpec((out_dim, tile_b), lambda i: (0, i))

    weight_bytes = sum(int(a.size) * 4 for a in flat_args)
    d1, d2, d3 = w1.shape[0], w2.shape[0], w3.shape[0]
    vmem_limit = int(
        2 * weight_bytes                                   # (double-buffered) resident params
        + 2 * tile_b * F * 2                               # bf16 input tiles (double-buffered)
        + 2 * tile_b * out_dim * 4                         # f32 output tiles (double-buffered)
        + tile_b * (F + d1 + d2 + 2 * d3) * 4              # f32 intermediates
        + (8 << 20)                                        # headroom
    )

    flops = 2 * B * sum(int(w.shape[0]) * int(w.shape[1]) for (w, _) in params)
    transcendentals = B * (d2 + out_dim)                   # ELU exp + sigmoid tanh
    bytes_accessed = int(x_t.size) * 2 + B * out_dim * 4 + weight_bytes

    out_t = pl.pallas_call(
        simplenet_kernel,
        out_shape=jax.ShapeDtypeStruct((out_dim, B), jnp.float32),
        grid_spec=pl.GridSpec(
            grid=grid,
            in_specs=[x_spec] + param_specs,
            out_specs=out_spec,
        ),
        compiler_params=pltpu.CompilerParams(
            dimension_semantics=("parallel",),   # shards batch tiles across TCs on v7x
            vmem_limit_bytes=vmem_limit,
        ),
        cost_estimate=pl.CostEstimate(
            flops=flops,
            transcendentals=transcendentals,
            bytes_accessed=bytes_accessed,
        ),
    )(x_t, *flat_args)

    return out_t.T                                           # [B, out_dim]


def _init_linear(key, fan_in, fan_out):
    """Deterministic init mimicking PyTorch nn.Linear default (uniform +/- 1/sqrt(fan_in))."""
    kw, kb = jax.random.split(key)
    bound = 1.0 / (fan_in ** 0.5)
    w = jax.random.uniform(kw, (fan_out, fan_in), jnp.float32, -bound, bound)
    b = jax.random.uniform(kb, (fan_out,), jnp.float32, -bound, bound)
    return w, b


def _reference_forward(x, params):
    """Pure-JAX reference of the same forward pass (exact sigmoid)."""
    (w1, b1), (w2, b2), (w3, b3), (w4, b4) = params
    h = jnp.maximum(x @ w1.T + b1, 0.0)                      # relu; dropout -> identity (eval)
    h = x2 = h @ w2.T + b2
    h = jnp.where(x2 > 0, x2, jnp.exp(jnp.minimum(x2, 0.0)) - 1.0)   # elu
    x3 = h @ w3.T + b3
    h = jnp.where(x3 > 0, x3, 0.01 * x3)                     # leaky_relu
    z = h @ w4.T + b4
    return 1.0 / (1.0 + jnp.exp(-z))                         # sigmoid


if __name__ == "__main__":
    key = jax.random.PRNGKey(0)
    k_x, k1, k2, k3, k4 = jax.random.split(key, 5)

    # SimpleNet([32, 64,'relu','dropout', 32,'elu', 16,'leaky_relu', 1,'sigmoid'])
    dims = [32, 64, 32, 16, 1]
    B = 512   # small demo batch; tile clamp -> tile_b=256, 2-step grid (pipelining + megacore)

    x = jax.random.normal(k_x, (B, dims[0]), jnp.float32)
    params = [
        _init_linear(k1, dims[0], dims[1]),
        _init_linear(k2, dims[1], dims[2]),
        _init_linear(k3, dims[2], dims[3]),
        _init_linear(k4, dims[3], dims[4]),
    ]

    out = simplenet_forward(x, params)
    out = jax.block_until_ready(out)

    # Reference uses the same bf16-quantized input the kernel streams from HBM,
    # so the comparison isolates kernel error (f32 math + exact tanh-sigmoid).
    x_q = x.astype(jnp.bfloat16).astype(jnp.float32)
    ref = _reference_forward(x_q, params)

    assert out.shape == (B, dims[-1]), f"bad shape {out.shape}"
    assert jnp.allclose(out, ref, atol=2e-3, rtol=2e-3), "mismatch vs pure-JAX reference"

    print("KERNEL_OK")
</pallas_src>

<mosaic_0001>
module attributes {stable_mosaic.version = 11 : i64} {
  func.func @simplenet_kernel(%arg0: i32, %arg1: memref<32x256xbf16, #tpu.memory_space<vmem>>, %arg2: memref<64x32xf32, #tpu.memory_space<vmem>>, %arg3: memref<64x1xf32, #tpu.memory_space<vmem>>, %arg4: memref<32x64xf32, #tpu.memory_space<vmem>>, %arg5: memref<32x1xf32, #tpu.memory_space<vmem>>, %arg6: memref<16x32xf32, #tpu.memory_space<vmem>>, %arg7: memref<16x1xf32, #tpu.memory_space<vmem>>, %arg8: memref<16x1xf32, #tpu.memory_space<vmem>>, %arg9: memref<1x1xf32, #tpu.memory_space<vmem>>, %arg10: memref<1x256xf32, #tpu.memory_space<vmem>>) attributes {dimension_semantics = [#tpu.dimension_semantics<parallel>], iteration_bounds = array<i64: 2>, scalar_prefetch = 0 : i64, scratch_operands = 0 : i64, tpu.core_type = #tpu.core_type<tc>, window_params = [{transform_indices = @transform_0, window_bounds = array<i64: 32, 256>}, {pipeline_mode = #tpu.pipeline_mode<synchronous>, transform_indices = @transform_1, window_bounds = array<i64: 64, 32>}, {pipeline_mode = #tpu.pipeline_mode<synchronous>, transform_indices = @transform_2, window_bounds = array<i64: 64, 1>}, {pipeline_mode = #tpu.pipeline_mode<synchronous>, transform_indices = @transform_3, window_bounds = array<i64: 32, 64>}, {pipeline_mode = #tpu.pipeline_mode<synchronous>, transform_indices = @transform_4, window_bounds = array<i64: 32, 1>}, {pipeline_mode = #tpu.pipeline_mode<synchronous>, transform_indices = @transform_5, window_bounds = array<i64: 16, 32>}, {pipeline_mode = #tpu.pipeline_mode<synchronous>, transform_indices = @transform_6, window_bounds = array<i64: 16, 1>}, {pipeline_mode = #tpu.pipeline_mode<synchronous>, transform_indices = @transform_7, window_bounds = array<i64: 16, 1>}, {pipeline_mode = #tpu.pipeline_mode<synchronous>, transform_indices = @transform_8, window_bounds = array<i64: 1, 1>}, {transform_indices = @transform_9, window_bounds = array<i64: 1, 256>}]} {
    %c0 = arith.constant 0 : index
    %c0_0 = arith.constant 0 : index
    %0 = vector.load %arg1[%c0, %c0_0] : memref<32x256xbf16, #tpu.memory_space<vmem>>, vector<32x256xbf16>
    %1 = arith.extf %0 : vector<32x256xbf16> to vector<32x256xf32>
    %c0_1 = arith.constant 0 : index
    %c0_2 = arith.constant 0 : index
    %2 = vector.load %arg2[%c0_1, %c0_2] : memref<64x32xf32, #tpu.memory_space<vmem>>, vector<64x32xf32>
    %cst = arith.constant dense<0.000000e+00> : vector<64x256xf32>
    %3 = tpu.matmul %2, %1, %cst {dimension_numbers = #tpu.dot_dimension_numbers<[1], [0], [0], [1], [0, 0, 1, 1], [], []>} : vector<64x32xf32>, vector<32x256xf32>, vector<64x256xf32> -> vector<64x256xf32>
    %c0_3 = arith.constant 0 : index
    %c0_4 = arith.constant 0 : index
    %4 = vector.load %arg3[%c0_3, %c0_4] : memref<64x1xf32, #tpu.memory_space<vmem>>, vector<64x1xf32>
    %5 = vector.broadcast %4 : vector<64x1xf32> to vector<64x256xf32>
    %6 = arith.addf %3, %5 : vector<64x256xf32>
    %cst_5 = arith.constant 0.000000e+00 : f32
    %7 = vector.broadcast %cst_5 : f32 to vector<64x256xf32>
    %8 = arith.maximumf %6, %7 : vector<64x256xf32>
    %c0_6 = arith.constant 0 : index
    %c0_7 = arith.constant 0 : index
    %9 = vector.load %arg4[%c0_6, %c0_7] : memref<32x64xf32, #tpu.memory_space<vmem>>, vector<32x64xf32>
    %cst_8 = arith.constant dense<0.000000e+00> : vector<32x256xf32>
    %10 = tpu.matmul %9, %8, %cst_8 {dimension_numbers = #tpu.dot_dimension_numbers<[1], [0], [0], [1], [0, 0, 1, 1], [], []>} : vector<32x64xf32>, vector<64x256xf32>, vector<32x256xf32> -> vector<32x256xf32>
    %c0_9 = arith.constant 0 : index
    %c0_10 = arith.constant 0 : index
    %11 = vector.load %arg5[%c0_9, %c0_10] : memref<32x1xf32, #tpu.memory_space<vmem>>, vector<32x1xf32>
    %12 = vector.broadcast %11 : vector<32x1xf32> to vector<32x256xf32>
    %13 = arith.addf %10, %12 : vector<32x256xf32>
    %cst_11 = arith.constant 0.000000e+00 : f32
    %14 = vector.broadcast %cst_11 : f32 to vector<32x256xf32>
    %15 = arith.cmpf ogt, %13, %14 : vector<32x256xf32>
    %cst_12 = arith.constant 0.000000e+00 : f32
    %16 = vector.broadcast %cst_12 : f32 to vector<32x256xf32>
    %17 = arith.minimumf %13, %16 : vector<32x256xf32>
    %18 = math.exp %17 : vector<32x256xf32>
    %cst_13 = arith.constant 1.000000e+00 : f32
    %19 = vector.broadcast %cst_13 : f32 to vector<32x256xf32>
    %20 = arith.subf %18, %19 : vector<32x256xf32>
    %21 = arith.select %15, %13, %20 : vector<32x256xi1>, vector<32x256xf32>
    %c0_14 = arith.constant 0 : index
    %c0_15 = arith.constant 0 : index
    %22 = vector.load %arg6[%c0_14, %c0_15] : memref<16x32xf32, #tpu.memory_space<vmem>>, vector<16x32xf32>
    %cst_16 = arith.constant dense<0.000000e+00> : vector<16x256xf32>
    %23 = tpu.matmul %22, %21, %cst_16 {dimension_numbers = #tpu.dot_dimension_numbers<[1], [0], [0], [1], [0, 0, 1, 1], [], []>} : vector<16x32xf32>, vector<32x256xf32>, vector<16x256xf32> -> vector<16x256xf32>
    %c0_17 = arith.constant 0 : index
    %c0_18 = arith.constant 0 : index
    %24 = vector.load %arg7[%c0_17, %c0_18] : memref<16x1xf32, #tpu.memory_space<vmem>>, vector<16x1xf32>
    %25 = vector.broadcast %24 : vector<16x1xf32> to vector<16x256xf32>
    %26 = arith.addf %23, %25 : vector<16x256xf32>
    %cst_19 = arith.constant 0.000000e+00 : f32
    %27 = vector.broadcast %cst_19 : f32 to vector<16x256xf32>
    %28 = arith.cmpf ogt, %26, %27 : vector<16x256xf32>
    %cst_20 = arith.constant 0.00999999977 : f32
    %29 = vector.broadcast %cst_20 : f32 to vector<16x256xf32>
    %30 = arith.mulf %29, %26 : vector<16x256xf32>
    %31 = arith.select %28, %26, %30 : vector<16x256xi1>, vector<16x256xf32>
    %c0_21 = arith.constant 0 : index
    %c0_22 = arith.constant 0 : index
    %32 = vector.load %arg8[%c0_21, %c0_22] : memref<16x1xf32, #tpu.memory_space<vmem>>, vector<16x1xf32>
    %33 = vector.broadcast %32 : vector<16x1xf32> to vector<16x256xf32>
    %34 = arith.mulf %31, %33 : vector<16x256xf32>
    %cst_23 = arith.constant dense<0.000000e+00> : vector<256xf32>
    %35 = vector.multi_reduction <add>, %34, %cst_23 [0] : vector<16x256xf32> to vector<256xf32>
    %36 = vector.shape_cast %35 : vector<256xf32> to vector<1x256xf32>
    %c0_24 = arith.constant 0 : index
    %c0_25 = arith.constant 0 : index
    %37 = vector.load %arg9[%c0_24, %c0_25] : memref<1x1xf32, #tpu.memory_space<vmem>>, vector<1x1xf32>
    %38 = vector.broadcast %37 : vector<1x1xf32> to vector<1x256xf32>
    %39 = arith.addf %36, %38 : vector<1x256xf32>
    %cst_26 = arith.constant 5.000000e-01 : f32
    %40 = vector.broadcast %cst_26 : f32 to vector<1x256xf32>
    %41 = arith.mulf %40, %39 : vector<1x256xf32>
    %42 = math.tanh %41 : vector<1x256xf32>
    %cst_27 = arith.constant 1.000000e+00 : f32
    %43 = vector.broadcast %cst_27 : f32 to vector<1x256xf32>
    %44 = arith.addf %42, %43 : vector<1x256xf32>
    %cst_28 = arith.constant 5.000000e-01 : f32
    %45 = vector.broadcast %cst_28 : f32 to vector<1x256xf32>
    %46 = arith.mulf %45, %44 : vector<1x256xf32>
    %c0_29 = arith.constant 0 : index
    %c0_30 = arith.constant 0 : index
    %47 = vector.load %arg10[%c0_29, %c0_30] : memref<1x256xf32, #tpu.memory_space<vmem>>, vector<1x256xf32>
    tpu.vector_store %arg10[%c0_29, %c0_30], %46 {strides = array<i32>} : memref<1x256xf32, #tpu.memory_space<vmem>>, vector<1x256xf32>,
    return
  }
  func.func @transform_0(%arg0: i32) -> (i32, i32) {
    %c0_i32 = arith.constant 0 : i32
    %c0_i32_0 = arith.constant 0 : i32
    return %c0_i32, %arg0 : i32, i32
  }
  func.func @transform_1(%arg0: i32) -> (i32, i32) {
    %c0_i32 = arith.constant 0 : i32
    %c0_i32_0 = arith.constant 0 : i32
    %c0_i32_1 = arith.constant 0 : i32
    return %c0_i32, %c0_i32_0 : i32, i32
  }
  func.func @transform_2(%arg0: i32) -> (i32, i32) {
    %c0_i32 = arith.constant 0 : i32
    %c0_i32_0 = arith.constant 0 : i32
    %c0_i32_1 = arith.constant 0 : i32
    return %c0_i32, %c0_i32_0 : i32, i32
  }
  func.func @transform_3(%arg0: i32) -> (i32, i32) {
    %c0_i32 = arith.constant 0 : i32
    %c0_i32_0 = arith.constant 0 : i32
    %c0_i32_1 = arith.constant 0 : i32
    return %c0_i32, %c0_i32_0 : i32, i32
  }
  func.func @transform_4(%arg0: i32) -> (i32, i32) {
    %c0_i32 = arith.constant 0 : i32
    %c0_i32_0 = arith.constant 0 : i32
    %c0_i32_1 = arith.constant 0 : i32
    return %c0_i32, %c0_i32_0 : i32, i32
  }
  func.func @transform_5(%arg0: i32) -> (i32, i32) {
    %c0_i32 = arith.constant 0 : i32
    %c0_i32_0 = arith.constant 0 : i32
    %c0_i32_1 = arith.constant 0 : i32
    return %c0_i32, %c0_i32_0 : i32, i32
  }
  func.func @transform_6(%arg0: i32) -> (i32, i32) {
    %c0_i32 = arith.constant 0 : i32
    %c0_i32_0 = arith.constant 0 : i32
    %c0_i32_1 = arith.constant 0 : i32
    return %c0_i32, %c0_i32_0 : i32, i32
  }
  func.func @transform_7(%arg0: i32) -> (i32, i32) {
    %c0_i32 = arith.constant 0 : i32
    %c0_i32_0 = arith.constant 0 : i32
    %c0_i32_1 = arith.constant 0 : i32
    return %c0_i32, %c0_i32_0 : i32, i32
  }
  func.func @transform_8(%arg0: i32) -> (i32, i32) {
    %c0_i32 = arith.constant 0 : i32
    %c0_i32_0 = arith.constant 0 : i32
    %c0_i32_1 = arith.constant 0 : i32
    return %c0_i32, %c0_i32_0 : i32, i32
  }
  func.func @transform_9(%arg0: i32) -> (i32, i32) {
    %c0_i32 = arith.constant 0 : i32
    %c0_i32_0 = arith.constant 0 : i32
    return %c0_i32, %arg0 : i32, i32
  }
}

</mosaic_0001>

<llo_original>
// kernel: tpu_custom_call.1
$region0: #{tpu_custom_call.1}
  #allocation0 [shape = 'u32[]', space=smem, size = 0x4, offset = 0x4, fixed_abs, tag = 'smem constant byte address 0x4 - core index']
  #allocation1 [shape = 'u32[144,128]{1,0:T(1,128)}', space=vmem, size = 0x12000, scoped, tag = 'internal scratch']
  #allocation2 [shape = 'f32[1,1]{1,0:T(1,128)S(1)}', space=vmem, size = 0x200, scoped, tag = 'scoped memory for tpu_custom_call.1']
  %s0 = inlined_call_operand.vmem [shape: bf16[32,512], index: 0, kind: input, shape index: {}]
  %s1 = inlined_call_operand.vmem [shape: f32[64,32], index: 1, kind: input, shape index: {}]
  %s2 = inlined_call_operand.vmem [shape: f32[64,1], index: 2, kind: input, shape index: {}]
  %s3 = inlined_call_operand.vmem [shape: f32[32,64], index: 3, kind: input, shape index: {}]
  %s4 = inlined_call_operand.vmem [shape: f32[32,1], index: 4, kind: input, shape index: {}]
  %s5 = inlined_call_operand.vmem [shape: f32[16,32], index: 5, kind: input, shape index: {}]
  %s6 = inlined_call_operand.vmem [shape: f32[16,1], index: 6, kind: input, shape index: {}]
  %s7 = inlined_call_operand.vmem [shape: f32[16,1], index: 7, kind: input, shape index: {}]
  %s8 = inlined_call_operand.<no memory space> [shape: f32[1,1], index: 8, kind: input, shape index: {}]
  %s9 = inlined_call_operand.hbm [shape: f32[1,512], index: 9, kind: output, shape index: {}]
  %s10 = sld [smem:[#allocation0]]
  $region107: #{tpu_custom_call.1} parent=0
    _
  %s12 = ssub.s32 1, %s10
  %s13 = scalar_select 0, %s12, %s10
  %v14 = vstv %s8
  %15 = vst [vmem:[#allocation2] sm:$0x1] %v14
  $region1: #{tpu_custom_call.1} parent=0
    #allocation3 [shape = 'u8[32768]{0}', space=vmem, size = 0x8000, scoped, tag = 'input window, operand 0']
    #allocation4 [shape = 'u8[2048]{0}', space=vmem, size = 0x800, scoped, tag = 'output window, operand 0']
    #allocation5 [shape = 's32[2]{0}', space=sflag, size = 0x8, scoped, tag = 'scoped memory for tpu_custom_call.1']
    %16 = vsyncpa [#allocation5], 0
    %s17 = scalar_lea.sflag [#allocation5], 1
    %18 = vsyncpa %s17, 0
    loop: start=0, step=1, limit=4
    $region2: #{tpu_custom_call.1} parent=1 // loop_pre_header
      _
    $region3: #{tpu_custom_call.1} parent=1 // loop_header
      %s20 = sphi 0, %s24
      %p21 = scmp.ge.s32.totalorder %s20, 4
      %s30 = sphi 0, %s32
      %s33 = sphi 0, %s30
      %s34 = sphi 0, %s33
      %s50 = sphi 0, %s34
      %s54 = sphi 0, %s54
      %s56 = sphi 0, %s54
      %s57 = sphi 0, %s56
      %s71 = sphi 0, %s57
      %s75 = sphi 0, %s75
      %s77 = sphi 0, %s75
      %s78 = sphi 0, %s77
      %s92 = sphi 0, %s78
      %s96 = sphi 0, %s96
      %s98 = sphi 0, %s96
      %s99 = sphi 0, %s98
      %s113 = sphi 0, %s99
      %s117 = sphi 0, %s117
      %s119 = sphi 0, %s117
      %s120 = sphi 0, %s119
      %s134 = sphi 0, %s120
      %s138 = sphi 0, %s138
      %s140 = sphi 0, %s138
      %s141 = sphi 0, %s140
      %s155 = sphi 0, %s141
      %s159 = sphi 0, %s159
      %s161 = sphi 0, %s159
      %s162 = sphi 0, %s161
      %s176 = sphi 0, %s162
      %s180 = sphi 0, %s180
      %s182 = sphi 0, %s180
      %s183 = sphi 0, %s182
      %s197 = sphi 0, %s183
      %s201 = sphi 0, %s201
      %s203 = sphi 0, %s201
      %s204 = sphi 0, %s203
      %s218 = sphi 0, %s204
      %s224 = sphi 0, %s226
      %s227 = sphi 0, %s224
      %s228 = sphi 0, %s227
      %s244 = sphi 0, %s228
    $region4: #{tpu_custom_call.1} parent=1 // loop_header_branch
      %23 = sbr.rel (%p21) target = $region8
    $region5: #{tpu_custom_call.1} parent=1 // loop_body
      %s25 = ssub.s32 %s20, 1
      %s26 = ssub.s32 %s20, 2
      %s27 = sadd.s32 %s20, 1
      %s28 = ssub.s32 %s20, %s27
      %p29 = scmp.eq.s32.totalorder %s28, 0
      %s31 = sadd.s32 %s30, 1
      %s32 = scalar_select %p29, %s30, %s31
      %p35 = pneg %p29
      %p36 = scmp.eq.s32.totalorder %s20, 1
      %p37 = por %p35, %p36
      %p38 = scmp.ne.s32.totalorder %s30, %s33
      %p39 = scmp.eq.s32.totalorder %s20, 0
      %p40 = por %p38, %p39
      %p41 = scmp.ne.s32.totalorder %s30, %s33
      %p42 = scmp.eq.s32.totalorder %s25, 1
      %p43 = por %p41, %p42
      %p44 = scmp.ne.s32.totalorder %s33, %s34
      %p45 = scmp.eq.s32.totalorder %s25, 0
      %p46 = por %p44, %p45
      %p47 = scmp.ne.s32.totalorder %s33, %s34
      %p48 = scmp.eq.s32.totalorder %s26, 1
      %p49 = por %p47, %p48
      %p51 = scmp.ne.s32.totalorder %s34, %s50
      %p52 = scmp.eq.s32.totalorder %s26, 0
      %p53 = por %p51, %p52
      %s55 = sadd.s32 %s54, 1
      %p58 = scmp.eq.s32.totalorder %s20, 1
      %p59 = scmp.ne.s32.totalorder %s54, %s56
      %p60 = scmp.eq.s32.totalorder %s20, 0
      %p61 = por %p59, %p60
      %p62 = scmp.ne.s32.totalorder %s54, %s56
      %p63 = scmp.eq.s32.totalorder %s25, 1
      %p64 = por %p62, %p63
      %p65 = scmp.ne.s32.totalorder %s56, %s57
      %p66 = scmp.eq.s32.totalorder %s25, 0
      %p67 = por %p65, %p66
      %p68 = scmp.ne.s32.totalorder %s56, %s57
      %p69 = scmp.eq.s32.totalorder %s26, 1
      %p70 = por %p68, %p69
      %p72 = scmp.ne.s32.totalorder %s57, %s71
      %p73 = scmp.eq.s32.totalorder %s26, 0
      %p74 = por %p72, %p73
      %s76 = sadd.s32 %s75, 1
      %p79 = scmp.eq.s32.totalorder %s20, 1
      %p80 = scmp.ne.s32.totalorder %s75, %s77
      %p81 = scmp.eq.s32.totalorder %s20, 0
      %p82 = por %p80, %p81
      %p83 = scmp.ne.s32.totalorder %s75, %s77
      %p84 = scmp.eq.s32.totalorder %s25, 1
      %p85 = por %p83, %p84
      %p86 = scmp.ne.s32.totalorder %s77, %s78
      %p87 = scmp.eq.s32.totalorder %s25, 0
      %p88 = por %p86, %p87
      %p89 = scmp.ne.s32.totalorder %s77, %s78
      %p90 = scmp.eq.s32.totalorder %s26, 1
      %p91 = por %p89, %p90
      %p93 = scmp.ne.s32.totalorder %s78, %s92
      %p94 = scmp.eq.s32.totalorder %s26, 0
      %p95 = por %p93, %p94
      %s97 = sadd.s32 %s96, 1
      %p100 = scmp.eq.s32.totalorder %s20, 1
      %p101 = scmp.ne.s32.totalorder %s96, %s98
      %p102 = scmp.eq.s32.totalorder %s20, 0
      %p103 = por %p101, %p102
      %p104 = scmp.ne.s32.totalorder %s96, %s98
      %p105 = scmp.eq.s32.totalorder %s25, 1
      %p106 = por %p104, %p105
      %p107 = scmp.ne.s32.totalorder %s98, %s99
      %p108 = scmp.eq.s32.totalorder %s25, 0
      %p109 = por %p107, %p108
      %p110 = scmp.ne.s32.totalorder %s98, %s99
      %p111 = scmp.eq.s32.totalorder %s26, 1
      %p112 = por %p110, %p111
      %p114 = scmp.ne.s32.totalorder %s99, %s113
      %p115 = scmp.eq.s32.totalorder %s26, 0
      %p116 = por %p114, %p115
      %s118 = sadd.s32 %s117, 1
      %p121 = scmp.eq.s32.totalorder %s20, 1
      %p122 = scmp.ne.s32.totalorder %s117, %s119
      %p123 = scmp.eq.s32.totalorder %s20, 0
      %p124 = por %p122, %p123
      %p125 = scmp.ne.s32.totalorder %s117, %s119
      %p126 = scmp.eq.s32.totalorder %s25, 1
      %p127 = por %p125, %p126
      %p128 = scmp.ne.s32.totalorder %s119, %s120
      %p129 = scmp.eq.s32.totalorder %s25, 0
      %p130 = por %p128, %p129
      %p131 = scmp.ne.s32.totalorder %s119, %s120
      %p132 = scmp.eq.s32.totalorder %s26, 1
      %p133 = por %p131, %p132
      %p135 = scmp.ne.s32.totalorder %s120, %s134
      %p136 = scmp.eq.s32.totalorder %s26, 0
      %p137 = por %p135, %p136
      %s139 = sadd.s32 %s138, 1
      %p142 = scmp.eq.s32.totalorder %s20, 1
      %p143 = scmp.ne.s32.totalorder %s138, %s140
      %p144 = scmp.eq.s32.totalorder %s20, 0
      %p145 = por %p143, %p144
      %p146 = scmp.ne.s32.totalorder %s138, %s140
      %p147 = scmp.eq.s32.totalorder %s25, 1
      %p148 = por %p146, %p147
      %p149 = scmp.ne.s32.totalorder %s140, %s141
      %p150 = scmp.eq.s32.totalorder %s25, 0
      %p151 = por %p149, %p150
      %p152 = scmp.ne.s32.totalorder %s140, %s141
      %p153 = scmp.eq.s32.totalorder %s26, 1
      %p154 = por %p152, %p153
      %p156 = scmp.ne.s32.totalorder %s141, %s155
      %p157 = scmp.eq.s32.totalorder %s26, 0
      %p158 = por %p156, %p157
      %s160 = sadd.s32 %s159, 1
      %p163 = scmp.eq.s32.totalorder %s20, 1
      %p164 = scmp.ne.s32.totalorder %s159, %s161
      %p165 = scmp.eq.s32.totalorder %s20, 0
      %p166 = por %p164, %p165
      %p167 = scmp.ne.s32.totalorder %s159, %s161
      %p168 = scmp.eq.s32.totalorder %s25, 1
      %p169 = por %p167, %p168
      %p170 = scmp.ne.s32.totalorder %s161, %s162
      %p171 = scmp.eq.s32.totalorder %s25, 0
      %p172 = por %p170, %p171
      %p173 = scmp.ne.s32.totalorder %s161, %s162
      %p174 = scmp.eq.s32.totalorder %s26, 1
      %p175 = por %p173, %p174
      %p177 = scmp.ne.s32.totalorder %s162, %s176
      %p178 = scmp.eq.s32.totalorder %s26, 0
      %p179 = por %p177, %p178
      %s181 = sadd.s32 %s180, 1
      %p184 = scmp.eq.s32.totalorder %s20, 1
      %p185 = scmp.ne.s32.totalorder %s180, %s182
      %p186 = scmp.eq.s32.totalorder %s20, 0
      %p187 = por %p185, %p186
      %p188 = scmp.ne.s32.totalorder %s180, %s182
      %p189 = scmp.eq.s32.totalorder %s25, 1
      %p190 = por %p188, %p189
      %p191 = scmp.ne.s32.totalorder %s182, %s183
      %p192 = scmp.eq.s32.totalorder %s25, 0
      %p193 = por %p191, %p192
      %p194 = scmp.ne.s32.totalorder %s182, %s183
      %p195 = scmp.eq.s32.totalorder %s26, 1
      %p196 = por %p194, %p195
      %p198 = scmp.ne.s32.totalorder %s183, %s197
      %p199 = scmp.eq.s32.totalorder %s26, 0
      %p200 = por %p198, %p199
      %s202 = sadd.s32 %s201, 1
      %p205 = scmp.eq.s32.totalorder %s20, 1
      %p206 = scmp.ne.s32.totalorder %s201, %s203
      %p207 = scmp.eq.s32.totalorder %s20, 0
      %p208 = por %p206, %p207
      %p209 = scmp.ne.s32.totalorder %s201, %s203
      %p210 = scmp.eq.s32.totalorder %s25, 1
      %p211 = por %p209, %p210
      %p212 = scmp.ne.s32.totalorder %s203, %s204
      %p213 = scmp.eq.s32.totalorder %s25, 0
      %p214 = por %p212, %p213
      %p215 = scmp.ne.s32.totalorder %s203, %s204
      %p216 = scmp.eq.s32.totalorder %s26, 1
      %p217 = por %p215, %p216
      %p219 = scmp.ne.s32.totalorder %s204, %s218
      %p220 = scmp.eq.s32.totalorder %s26, 0
      %p221 = por %p219, %p220
      %s222 = ssub.s32 %s20, %s27
      %p223 = scmp.eq.s32.totalorder %s222, 0
      %s225 = sadd.s32 %s224, 1
      %s226 = scalar_select %p223, %s224, %s225
      %p229 = pneg %p223
      %p230 = scmp.eq.s32.totalorder %s20, 1
      %p231 = por %p229, %p230
      %p232 = scmp.ne.s32.totalorder %s224, %s227
      %p233 = scmp.eq.s32.totalorder %s20, 0
      %p234 = por %p232, %p233
      %p235 = scmp.ne.s32.totalorder %s224, %s227
      %p236 = scmp.eq.s32.totalorder %s25, 1
      %p237 = por %p235, %p236
      %p238 = scmp.ne.s32.totalorder %s227, %s228
      %p239 = scmp.eq.s32.totalorder %s25, 0
      %p240 = por %p238, %p239
      %p241 = scmp.ne.s32.totalorder %s227, %s228
      %p242 = scmp.eq.s32.totalorder %s26, 1
      %p243 = por %p241, %p242
      %p245 = scmp.ne.s32.totalorder %s228, %s244
      %p246 = scmp.eq.s32.totalorder %s26, 0
      %p247 = por %p245, %p246
      %p248 = scmp.le.s32.totalorder 1, %s20
      %p249 = scmp.lt.s32.totalorder %s20, 3
      %p250 = pnand %p248, %p249
      %p251 = pneg %p250
      // Predicated region
      $region9: #{tpu_custom_call.1} parent=5 // pred_check
        _
      $region10: #{tpu_custom_call.1} parent=5 // pred_check_branch
        %253 = sbr.rel (%p250) target = $region12
      $region11: #{tpu_custom_call.1} parent=5 // pred_region
        %s254 = ssub.s32 %s20, 1
        // Predicated region
        $region13: #{tpu_custom_call.1} parent=11 // pred_check
          %p255 = pneg %p67
        $region14: #{tpu_custom_call.1} parent=11 // pred_check_branch
          %257 = sbr.rel (%p255) target = $region16
        $region15: #{tpu_custom_call.1} parent=11 // pred_region
          _
        $region16: #{tpu_custom_call.1} parent=11 // pred_fallthru
          _
        // Predicated region
        $region17: #{tpu_custom_call.1} parent=11 // pred_check
          %p258 = pneg %p88
        $region18: #{tpu_custom_call.1} parent=11 // pred_check_branch
          %260 = sbr.rel (%p258) target = $region20
        $region19: #{tpu_custom_call.1} parent=11 // pred_region
          _
        $region20: #{tpu_custom_call.1} parent=11 // pred_fallthru
          _
        // Predicated region
        $region21: #{tpu_custom_call.1} parent=11 // pred_check
          %p261 = pneg %p109
        $region22: #{tpu_custom_call.1} parent=11 // pred_check_branch
          %263 = sbr.rel (%p261) target = $region24
        $region23: #{tpu_custom_call.1} parent=11 // pred_region
          _
        $region24: #{tpu_custom_call.1} parent=11 // pred_fallthru
          _
        // Predicated region
        $region25: #{tpu_custom_call.1} parent=11 // pred_check
          %p264 = pneg %p130
        $region26: #{tpu_custom_call.1} parent=11 // pred_check_branch
          %266 = sbr.rel (%p264) target = $region28
        $region27: #{tpu_custom_call.1} parent=11 // pred_region
          _
        $region28: #{tpu_custom_call.1} parent=11 // pred_fallthru
          _
        // Predicated region
        $region29: #{tpu_custom_call.1} parent=11 // pred_check
          %p267 = pneg %p151
        $region30: #{tpu_custom_call.1} parent=11 // pred_check_branch
          %269 = sbr.rel (%p267) target = $region32
        $region31: #{tpu_custom_call.1} parent=11 // pred_region
          _
        $region32: #{tpu_custom_call.1} parent=11 // pred_fallthru
          _
        // Predicated region
        $region33: #{tpu_custom_call.1} parent=11 // pred_check
          %p270 = pneg %p172
        $region34: #{tpu_custom_call.1} parent=11 // pred_check_branch
          %272 = sbr.rel (%p270) target = $region36
        $region35: #{tpu_custom_call.1} parent=11 // pred_region
          _
        $region36: #{tpu_custom_call.1} parent=11 // pred_fallthru
          _
        // Predicated region
        $region37: #{tpu_custom_call.1} parent=11 // pred_check
          %p273 = pneg %p193
        $region38: #{tpu_custom_call.1} parent=11 // pred_check_branch
          %275 = sbr.rel (%p273) target = $region40
        $region39: #{tpu_custom_call.1} parent=11 // pred_region
          _
        $region40: #{tpu_custom_call.1} parent=11 // pred_fallthru
          _
        // Predicated region
        $region41: #{tpu_custom_call.1} parent=11 // pred_check
          %p276 = pneg %p214
        $region42: #{tpu_custom_call.1} parent=11 // pred_check_branch
          %278 = sbr.rel (%p276) target = $region44
        $region43: #{tpu_custom_call.1} parent=11 // pred_region
          _
        $region44: #{tpu_custom_call.1} parent=11 // pred_fallthru
          _
      $region12: #{tpu_custom_call.1} parent=5 // pred_fallthru
        _
      %p279 = scmp.lt.s32.totalorder %s20, 2
      // Predicated region
      $region45: #{tpu_custom_call.1} parent=5 // pred_check
        %p280 = pneg %p279
      $region46: #{tpu_custom_call.1} parent=5 // pred_check_branch
        %282 = sbr.rel (%p280) target = $region48
      $region47: #{tpu_custom_call.1} parent=5 // pred_region
        // Predicated region
        $region49: #{tpu_custom_call.1} parent=47 // pred_check
          %p283 = pneg %p40
        $region50: #{tpu_custom_call.1} parent=47 // pred_check_branch
          %285 = sbr.rel (%p283) target = $region52
        $region51: #{tpu_custom_call.1} parent=47 // pred_region
          %s286 = sand.u32 %s30, 1
          %s287 = sand.u32 %s30, 1
          %s288 = smul.addr %s287, 32
          %s289 = scalar_lea.vmem [#allocation3], %s288
          %s290 = smul.u32 2, %s20
          %s291 = smul.addr %s290, 4
          %s292 = scalar_lea.vmem %s0, %s291
          // Predicated region
          $region53: #{tpu_custom_call.1} parent=51 // pred_check
            _
          $region54: #{tpu_custom_call.1} parent=51 // pred_check_branch
            %294 = sbr.rel (0) target = $region56
          $region55: #{tpu_custom_call.1} parent=51 // pred_region
            // Predicated region
            $region57: #{tpu_custom_call.1} parent=55 // pred_check
              _
            $region58: #{tpu_custom_call.1} parent=55 // pred_check_branch
              %296 = sbr.rel (0) target = $region60
            $region59: #{tpu_custom_call.1} parent=55 // pred_region
              // Predicated region
              $region72: #{tpu_custom_call.1} parent=59 // pred_check
                _
              $region73: #{tpu_custom_call.1} parent=59 // pred_check_branch
                %317 = sbr.rel (0) target = $region75
              $region74: #{tpu_custom_call.1} parent=59 // pred_region
                loop: start=0, step=1, limit=1
                $region76: #{tpu_custom_call.1} parent=74 // loop_pre_header
                  _
                $region77: #{tpu_custom_call.1} parent=74 // loop_header
                  %s319 = sphi 0, %s323
                  %p320 = scmp.ge.s32.totalorder %s319, 1
                  %s324 = sphi %s292, %s292
                  %s325 = sphi %s289, %s289
                $region78: #{tpu_custom_call.1} parent=74 // loop_header_branch
                  %322 = sbr.rel (%p320) target = $region82
                $region79: #{tpu_custom_call.1} parent=74 // loop_body
                  %v326 = vld [vmem:[%s324] sm:$0xff]
                  %327 = vst [vmem:[%s325] sm:$0xff] %v326
                  %v328 = vld [vmem:[%s324 + $0x10] sm:$0xff]
                  %329 = vst [vmem:[%s325 + $0x8] sm:$0xff] %v328
                  %v330 = vld [vmem:[%s324 + $0x20] sm:$0xff]
                  %331 = vst [vmem:[%s325 + $0x10] sm:$0xff] %v330
                  %v332 = vld [vmem:[%s324 + $0x30] sm:$0xff]
                  %333 = vst [vmem:[%s325 + $0x18] sm:$0xff] %v332
                $region80: #{tpu_custom_call.1} parent=74 // loop_footer
                  %s323 = sadd.s32 1, %s319
                $region81: #{tpu_custom_call.1} parent=74 // loop_footer_branch
                  %318 = sbr.rel target = $region77
                $region82: #{tpu_custom_call.1} parent=74 // loop_exit
                  _
              $region75: #{tpu_custom_call.1} parent=59 // pred_fallthru
                _
              // Predicated region
              $region83: #{tpu_custom_call.1} parent=59 // pred_check
                _
              $region84: #{tpu_custom_call.1} parent=59 // pred_check_branch
                %335 = sbr.rel target = $region86
              $region85: #{tpu_custom_call.1} parent=59 // pred_region
                _
              $region86: #{tpu_custom_call.1} parent=59 // pred_fallthru
                _
            $region60: #{tpu_custom_call.1} parent=55 // pred_fallthru
              _
            // Predicated region
            $region61: #{tpu_custom_call.1} parent=55 // pred_check
              _
            $region62: #{tpu_custom_call.1} parent=55 // pred_check_branch
              %298 = sbr.rel target = $region64
            $region63: #{tpu_custom_call.1} parent=55 // pred_region
              loop: start=0, step=1, limit=1
              $region65: #{tpu_custom_call.1} parent=63 // loop_pre_header
                _
              $region66: #{tpu_custom_call.1} parent=63 // loop_header
                %s301 = sphi 0, %s305
                %p302 = scmp.ge.s32.totalorder %s301, 1
                %s306 = sphi %s292, %s292
                %s307 = sphi %s289, %s289
              $region67: #{tpu_custom_call.1} parent=63 // loop_header_branch
                %304 = sbr.rel (%p302) target = $region71
              $region68: #{tpu_custom_call.1} parent=63 // loop_body
                %v308 = vld [vmem:[%s306] sm:$0xff]
                %309 = vst [vmem:[%s307] sm:$0xff] %v308
                %v310 = vld [vmem:[%s306 + $0x10] sm:$0xff]
                %311 = vst [vmem:[%s307 + $0x8] sm:$0xff] %v310
                %v312 = vld [vmem:[%s306 + $0x20] sm:$0xff]
                %313 = vst [vmem:[%s307 + $0x10] sm:$0xff] %v312
                %v314 = vld [vmem:[%s306 + $0x30] sm:$0xff]
                %315 = vst [vmem:[%s307 + $0x18] sm:$0xff] %v314
              $region69: #{tpu_custom_call.1} parent=63 // loop_footer
                %s305 = sadd.s32 1, %s301
              $region70: #{tpu_custom_call.1} parent=63 // loop_footer_branch
                %300 = sbr.rel target = $region66
              $region71: #{tpu_custom_call.1} parent=63 // loop_exit
                _
            $region64: #{tpu_custom_call.1} parent=55 // pred_fallthru
              _
          $region56: #{tpu_custom_call.1} parent=51 // pred_fallthru
            _
          %336 = vnop
        $region52: #{tpu_custom_call.1} parent=47 // pred_fallthru
          _
      $region48: #{tpu_custom_call.1} parent=5 // pred_fallthru
        _
      %p337 = scmp.le.s32.totalorder 1, %s20
      %p338 = scmp.lt.s32.totalorder %s20, 3
      %p339 = pnand %p337, %p338
      %p340 = pneg %p339
      // Predicated region
      $region87: #{tpu_custom_call.1} parent=5 // pred_check
        _
      $region88: #{tpu_custom_call.1} parent=5 // pred_check_branch
        %342 = sbr.rel (%p339) target = $region90
      $region89: #{tpu_custom_call.1} parent=5 // pred_region
        %s343 = ssub.s32 %s20, 1
        %s344 = sand.u32 %s33, 1
        %s345 = sand.u32 %s33, 1
        %s346 = smul.addr %s345, 32
        %s347 = scalar_lea.vmem [#allocation3], %s346
        // Predicated region
        $region91: #{tpu_custom_call.1} parent=89 // pred_check
          %p348 = pneg %p46
        $region92: #{tpu_custom_call.1} parent=89 // pred_check_branch
          %350 = sbr.rel (%p348) target = $region94
        $region93: #{tpu_custom_call.1} parent=89 // pred_region
          _
        $region94: #{tpu_custom_call.1} parent=89 // pred_fallthru
          _
        %s351 = sand.u32 %s33, 1
        %s352 = sand.u32 %s33, 1
        %s353 = smul.addr %s352, 32
        %s354 = scalar_lea.vmem [#allocation3], %s353
        %p355 = pneg %p46
        %p356 = pneg %p43
        %p357 = pneg %p67
        %p358 = pneg %p64
        %p359 = pneg %p88
        %p360 = pneg %p85
        %p361 = pneg %p109
        %p362 = pneg %p106
        %p363 = pneg %p130
        %p364 = pneg %p127
        %p365 = pneg %p151
        %p366 = pneg %p148
        %p367 = pneg %p172
        %p368 = pneg %p169
        %p369 = pneg %p193
        %p370 = pneg %p190
        %p371 = pneg %p214
        %p372 = pneg %p211
        %p373 = pneg %p240
        %p374 = pneg %p237
        %s375 = sand.u32 %s227, 1
        %s376 = scalar_lea.sflag [#allocation5], %s375
        %s377 = sand.u32 %s227, 1
        %s378 = smul.addr %s377, 2
        %s379 = scalar_lea.vmem [#allocation4], %s378
        %s380 = smul.u32 2, %s25
        %s381 = smul.u32 2, %s25
        %v382 = vld [vmem:[%s347] sm:$0xff]
        %v383 = vld [vmem:[%s347 + $0x8] sm:$0xff]
        %v384 = vld [vmem:[%s347 + $0x10] sm:$0xff]
        %v385 = vld [vmem:[%s347 + $0x18] sm:$0xff]
        %v386 = vunpack.c.l.bf16 %v382
        %v387 = vunpack.c.h.bf16 %v382
        %v388 = vunpack.c.l.bf16 %v383
        %v389 = vunpack.c.h.bf16 %v383
        %v390 = vunpack.c.l.bf16 %v384
        %v391 = vunpack.c.h.bf16 %v384
        %v392 = vunpack.c.l.bf16 %v385
        %v393 = vunpack.c.h.bf16 %v385
        %v394 = vld [vmem:[%s1] sm:$0xff]
        %v395 = vld [vmem:[%s1 + $0x8] sm:$0xff]
        %v396 = vld [vmem:[%s1 + $0x10] sm:$0xff]
        %v397 = vld [vmem:[%s1 + $0x18] sm:$0xff]
        %v398 = vld [vmem:[%s1 + $0x20] sm:$0xff]
        %v399 = vld [vmem:[%s1 + $0x28] sm:$0xff]
        %v400 = vld [vmem:[%s1 + $0x30] sm:$0xff]
        %v401 = vld [vmem:[%s1 + $0x38] sm:$0xff]
        %v402 = vld [vmem:[%s2] sm:$0xff]
        %v403 = vld [vmem:[%s2 + $0x8] sm:$0xff]
        %v404 = vld [vmem:[%s2 + $0x10] sm:$0xff]
        %v405 = vld [vmem:[%s2 + $0x18] sm:$0xff]
        %v406 = vld [vmem:[%s2 + $0x20] sm:$0xff]
        %v407 = vld [vmem:[%s2 + $0x28] sm:$0xff]
        %v408 = vld [vmem:[%s2 + $0x30] sm:$0xff]
        %v409 = vld [vmem:[%s2 + $0x38] sm:$0xff]
        %411 = vset.pattern.permute.xlu0 0
        %412 = vperm.xlu0 %411, %v402
        %v413 = vpop.permute.xlu0 %412
        %416 = vset.pattern.permute.xlu0 0
        %417 = vperm.xlu0 %416, %v403
        %v418 = vpop.permute.xlu0 %417
        %421 = vset.pattern.permute.xlu0 0
        %422 = vperm.xlu0 %421, %v404
        %v423 = vpop.permute.xlu0 %422
        %426 = vset.pattern.permute.xlu0 0
        %427 = vperm.xlu0 %426, %v405
        %v428 = vpop.permute.xlu0 %427
        %431 = vset.pattern.permute.xlu0 0
        %432 = vperm.xlu0 %431, %v406
        %v433 = vpop.permute.xlu0 %432
        %436 = vset.pattern.permute.xlu0 0
        %437 = vperm.xlu0 %436, %v407
        %v438 = vpop.permute.xlu0 %437
        %441 = vset.pattern.permute.xlu0 0
        %442 = vperm.xlu0 %441, %v408
        %v443 = vpop.permute.xlu0 %442
        %446 = vset.pattern.permute.xlu0 0
        %447 = vperm.xlu0 %446, %v409
        %v448 = vpop.permute.xlu0 %447
        %vm450 = vcmask 261120
        %v452 = vsel %vm450, %v394, 0
        %v455 = vsel %vm450, %v395, 0
        %v458 = vsel %vm450, %v396, 0
        %v461 = vsel %vm450, %v397, 0
        %v464 = vsel %vm450, %v398, 0
        %v467 = vsel %vm450, %v399, 0
        %v470 = vsel %vm450, %v400, 0
        %v473 = vsel %vm450, %v401, 0
        %475 = vmatprep.subr.mxu0 %v387
        %476 = vmatpush1.msra.mxu0 %v386
        %477 = vmatprep.subr.mxu0 %v389
        %478 = vmatpush1.msra.mxu0 %v388
        %479 = vmatprep.subr.mxu0 %v391
        %480 = vmatpush1.msra.mxu0 %v390
        %481 = vmatprep.subr.mxu0 %v393
        %482 = vmatpush1.msra.mxu0 %v392
        %483 = vmatprep.subr.mxu0 0.0
        %484 = vmatpush1.msra.mxu0 0.0
        %485 = vmatprep.subr.mxu0 0.0
        %486 = vmatpush1.msra.mxu0 0.0
        %487 = vmatprep.subr.mxu0 0.0
        %488 = vmatpush1.msra.mxu0 0.0
        %489 = vmatprep.subr.mxu0 0.0
        %490 = vmatpush1.msra.mxu0 0.0
        %491 = vmatprep.subr.mxu0 0.0
        %492 = vmatpush1.msra.mxu0 0.0
        %493 = vmatprep.subr.mxu0 0.0
        %494 = vmatpush1.msra.mxu0 0.0
        %495 = vmatprep.subr.mxu0 0.0
        %496 = vmatpush1.msra.mxu0 0.0
        %497 = vmatprep.subr.mxu0 0.0
        %498 = vmatpush1.msra.mxu0 0.0
        %499 = vmatprep.subr.mxu0 0.0
        %500 = vmatpush1.msra.mxu0 0.0
        %501 = vmatprep.subr.mxu0 0.0
        %502 = vmatpush1.msra.mxu0 0.0
        %503 = vmatprep.subr.mxu0 0.0
        %504 = vmatpush1.msra.mxu0 0.0
        %505 = vmatprep.subr.mxu0 0.0
        %506 = vmatpush1.msra.mxu0 0.0
        %507 = vmatprep.subr.mxu0 0.0
        %508 = vmatpush1.msra.mxu0 0.0
        %509 = vmatprep.subr.mxu0 0.0
        %510 = vmatpush1.msra.mxu0 0.0
        %511 = vmatprep.subr.mxu0 0.0
        %512 = vmatpush1.msra.mxu0 0.0
        %513 = vmatprep.subr.mxu0 0.0
        %514 = vmatpush1.msra.mxu0 0.0
        %515 = vmatprep.subr.mxu0 0.0
        %516 = vmatpush1.msra.mxu0 0.0
        %517 = vmatprep.subr.mxu0 0.0
        %518 = vmatpush1.msra.mxu0 0.0
        %519 = vmatprep.subr.mxu0 0.0
        %520 = vmatpush1.msra.mxu0 0.0
        %521 = vmatprep.subr.mxu0 0.0
        %522 = vmatpush1.msra.mxu0 0.0
        %523 = vmatprep.subr.mxu0 0.0
        %524 = vmatpush1.msra.mxu0 0.0
        %525 = vmatprep.subr.mxu0 0.0
        %526 = vmatpush1.msra.mxu0 0.0
        %527 = vmatprep.subr.mxu0 0.0
        %528 = vmatpush1.msra.mxu0 0.0
        %529 = vmatprep.subr.mxu0 0.0
        %530 = vmatpush1.msra.mxu0 0.0
        %531 = vmatprep.subr.mxu0 0.0
        %532 = vmatpush1.msra.mxu0 0.0
        %533 = vmatprep.subr.mxu0 0.0
        %534 = vmatpush1.msra.mxu0 0.0
        %535 = vmatprep.subr.mxu0 0.0
        %536 = vmatpush1.msra.mxu0 0.0
        %537 = vmatprep.subr.mxu0 0.0
        %538 = vmatpush1.msra.mxu0 0.0
        %539 = vmatprep.mubr.f32.mxu0 0.0
        %540 = vmatmul.mubr.f32.gmra.mrb[0].mxu0 %v452
        %v541 = vpop.f32.mrb[0].mxu0
        %v542 = vadd.f32 %v413, %v541
        %v543 = vpop.f32.mrb[0].mxu0
        %v544 = vadd.f32 %v413, %v543
        %545 = vmatprep.mubr.f32.mxu0 0.0
        %546 = vmatmul.mubr.f32.gmra.mrb[0].mxu0 %v455
        %v547 = vpop.f32.mrb[0].mxu0
        %v548 = vadd.f32 %v418, %v547
        %v549 = vpop.f32.mrb[0].mxu0
        %v550 = vadd.f32 %v418, %v549
        %551 = vmatprep.mubr.f32.mxu0 0.0
        %552 = vmatmul.mubr.f32.gmra.mrb[0].mxu0 %v458
        %v553 = vpop.f32.mrb[0].mxu0
        %v554 = vadd.f32 %v423, %v553
        %v555 = vpop.f32.mrb[0].mxu0
        %v556 = vadd.f32 %v423, %v555
        %557 = vmatprep.mubr.f32.mxu0 0.0
        %558 = vmatmul.mubr.f32.gmra.mrb[0].mxu0 %v461
        %v559 = vpop.f32.mrb[0].mxu0
        %v560 = vadd.f32 %v428, %v559
        %v561 = vpop.f32.mrb[0].mxu0
        %v562 = vadd.f32 %v428, %v561
        %563 = vmatprep.mubr.f32.mxu0 0.0
        %564 = vmatmul.mubr.f32.gmra.mrb[0].mxu0 %v464
        %v565 = vpop.f32.mrb[0].mxu0
        %v566 = vadd.f32 %v433, %v565
        %v567 = vpop.f32.mrb[0].mxu0
        %v568 = vadd.f32 %v433, %v567
        %569 = vmatprep.mubr.f32.mxu0 0.0
        %570 = vmatmul.mubr.f32.gmra.mrb[0].mxu0 %v467
        %v571 = vpop.f32.mrb[0].mxu0
        %v572 = vadd.f32 %v438, %v571
        %v573 = vpop.f32.mrb[0].mxu0
        %v574 = vadd.f32 %v438, %v573
        %575 = vmatprep.mubr.f32.mxu0 0.0
        %576 = vmatmul.mubr.f32.gmra.mrb[0].mxu0 %v470
        %v577 = vpop.f32.mrb[0].mxu0
        %v578 = vadd.f32 %v443, %v577
        %v579 = vpop.f32.mrb[0].mxu0
        %v580 = vadd.f32 %v443, %v579
        %581 = vmatprep.mubr.f32.mxu0 0.0
        %582 = vmatmul.mubr.f32.gmra.mrb[0].mxu0 %v473
        %v583 = vpop.f32.mrb[0].mxu0
        %v584 = vadd.f32 %v448, %v583
        %v585 = vpop.f32.mrb[0].mxu0
        %v586 = vadd.f32 %v448, %v585
        %587 = vdwg.mxu0
        %v588 = vmax.f32 %v542, 0.0
        %v589 = vmax.f32 %v544, 0.0
        %v590 = vmax.f32 %v548, 0.0
        %v591 = vmax.f32 %v550, 0.0
        %v592 = vmax.f32 %v554, 0.0
        %v593 = vmax.f32 %v556, 0.0
        %v594 = vmax.f32 %v560, 0.0
        %v595 = vmax.f32 %v562, 0.0
        %v596 = vmax.f32 %v566, 0.0
        %v597 = vmax.f32 %v568, 0.0
        %v598 = vmax.f32 %v572, 0.0
        %v599 = vmax.f32 %v574, 0.0
        %v600 = vmax.f32 %v578, 0.0
        %v601 = vmax.f32 %v580, 0.0
        %v602 = vmax.f32 %v584, 0.0
        %v603 = vmax.f32 %v586, 0.0
        %v604 = vld [vmem:[%s3] sm:$0xff]
        %v605 = vld [vmem:[%s3 + $0x8] sm:$0xff]
        %v606 = vld [vmem:[%s3 + $0x10] sm:$0xff]
        %v607 = vld [vmem:[%s3 + $0x18] sm:$0xff]
        %v608 = vld [vmem:[%s4] sm:$0xff]
        %v609 = vld [vmem:[%s4 + $0x8] sm:$0xff]
        %v610 = vld [vmem:[%s4 + $0x10] sm:$0xff]
        %v611 = vld [vmem:[%s4 + $0x18] sm:$0xff]
        %613 = vset.pattern.permute.xlu0 0
        %614 = vperm.xlu0 %613, %v608
        %v615 = vpop.permute.xlu0 %614
        %618 = vset.pattern.permute.xlu0 0
        %619 = vperm.xlu0 %618, %v609
        %v620 = vpop.permute.xlu0 %619
        %623 = vset.pattern.permute.xlu0 0
        %624 = vperm.xlu0 %623, %v610
        %v625 = vpop.permute.xlu0 %624
        %628 = vset.pattern.permute.xlu0 0
        %629 = vperm.xlu0 %628, %v611
        %v630 = vpop.permute.xlu0 %629
        %vm632 = vcmask 523264
        %v634 = vsel %vm632, %v604, 0
        %v637 = vsel %vm632, %v605, 0
        %v640 = vsel %vm632, %v606, 0
        %v643 = vsel %vm632, %v607, 0
        %645 = vmatprep.subr.mxu0 %v589
        %646 = vmatpush1.msra.mxu0 %v588
        %647 = vmatprep.subr.mxu0 %v591
        %648 = vmatpush1.msra.mxu0 %v590
        %649 = vmatprep.subr.mxu0 %v593
        %650 = vmatpush1.msra.mxu0 %v592
        %651 = vmatprep.subr.mxu0 %v595
        %652 = vmatpush1.msra.mxu0 %v594
        %653 = vmatprep.subr.mxu0 %v597
        %654 = vmatpush1.msra.mxu0 %v596
        %655 = vmatprep.subr.mxu0 %v599
        %656 = vmatpush1.msra.mxu0 %v598
        %657 = vmatprep.subr.mxu0 %v601
        %658 = vmatpush1.msra.mxu0 %v600
        %659 = vmatprep.subr.mxu0 %v603
        %660 = vmatpush1.msra.mxu0 %v602
        %661 = vmatprep.subr.mxu0 0.0
        %662 = vmatpush1.msra.mxu0 0.0
        %663 = vmatprep.subr.mxu0 0.0
        %664 = vmatpush1.msra.mxu0 0.0
        %665 = vmatprep.subr.mxu0 0.0
        %666 = vmatpush1.msra.mxu0 0.0
        %667 = vmatprep.subr.mxu0 0.0
        %668 = vmatpush1.msra.mxu0 0.0
        %669 = vmatprep.subr.mxu0 0.0
        %670 = vmatpush1.msra.mxu0 0.0
        %671 = vmatprep.subr.mxu0 0.0
        %672 = vmatpush1.msra.mxu0 0.0
        %673 = vmatprep.subr.mxu0 0.0
        %674 = vmatpush1.msra.mxu0 0.0
        %675 = vmatprep.subr.mxu0 0.0
        %676 = vmatpush1.msra.mxu0 0.0
        %677 = vmatprep.subr.mxu0 0.0
        %678 = vmatpush1.msra.mxu0 0.0
        %679 = vmatprep.subr.mxu0 0.0
        %680 = vmatpush1.msra.mxu0 0.0
        %681 = vmatprep.subr.mxu0 0.0
        %682 = vmatpush1.msra.mxu0 0.0
        %683 = vmatprep.subr.mxu0 0.0
        %684 = vmatpush1.msra.mxu0 0.0
        %685 = vmatprep.subr.mxu0 0.0
        %686 = vmatpush1.msra.mxu0 0.0
        %687 = vmatprep.subr.mxu0 0.0
        %688 = vmatpush1.msra.mxu0 0.0
        %689 = vmatprep.subr.mxu0 0.0
        %690 = vmatpush1.msra.mxu0 0.0
        %691 = vmatprep.subr.mxu0 0.0
        %692 = vmatpush1.msra.mxu0 0.0
        %693 = vmatprep.subr.mxu0 0.0
        %694 = vmatpush1.msra.mxu0 0.0
        %695 = vmatprep.subr.mxu0 0.0
        %696 = vmatpush1.msra.mxu0 0.0
        %697 = vmatprep.subr.mxu0 0.0
        %698 = vmatpush1.msra.mxu0 0.0
        %699 = vmatprep.subr.mxu0 0.0
        %700 = vmatpush1.msra.mxu0 0.0
        %701 = vmatprep.subr.mxu0 0.0
        %702 = vmatpush1.msra.mxu0 0.0
        %703 = vmatprep.subr.mxu0 0.0
        %704 = vmatpush1.msra.mxu0 0.0
        %705 = vmatprep.subr.mxu0 0.0
        %706 = vmatpush1.msra.mxu0 0.0
        %707 = vmatprep.subr.mxu0 0.0
        %708 = vmatpush1.msra.mxu0 0.0
        %709 = vmatprep.mubr.f32.mxu0 0.0
        %710 = vmatmul.mubr.f32.gmra.mrb[0].mxu0 %v634
        %v711 = vpop.f32.mrb[0].mxu0
        %v712 = vadd.f32 %v615, %v711
        %v713 = vpop.f32.mrb[0].mxu0
        %v714 = vadd.f32 %v615, %v713
        %715 = vmatprep.mubr.f32.mxu0 0.0
        %716 = vmatmul.mubr.f32.gmra.mrb[0].mxu0 %v637
        %v717 = vpop.f32.mrb[0].mxu0
        %v718 = vadd.f32 %v620, %v717
        %v719 = vpop.f32.mrb[0].mxu0
        %v720 = vadd.f32 %v620, %v719
        %721 = vmatprep.mubr.f32.mxu0 0.0
        %722 = vmatmul.mubr.f32.gmra.mrb[0].mxu0 %v640
        %v723 = vpop.f32.mrb[0].mxu0
        %v724 = vadd.f32 %v625, %v723
        %v725 = vpop.f32.mrb[0].mxu0
        %v726 = vadd.f32 %v625, %v725
        %727 = vmatprep.mubr.f32.mxu0 0.0
        %728 = vmatmul.mubr.f32.gmra.mrb[0].mxu0 %v643
        %v729 = vpop.f32.mrb[0].mxu0
        %v730 = vadd.f32 %v630, %v729
        %v731 = vpop.f32.mrb[0].mxu0
        %v732 = vadd.f32 %v630, %v731
        %733 = vdwg.mxu0
        %vm734 = vcmp.gt.f32.partialorder %v712, 0.0
        %vm735 = vcmp.gt.f32.partialorder %v714, 0.0
        %vm736 = vcmp.gt.f32.partialorder %v718, 0.0
        %vm737 = vcmp.gt.f32.partialorder %v720, 0.0
        %vm738 = vcmp.gt.f32.partialorder %v724, 0.0
        %vm739 = vcmp.gt.f32.partialorder %v726, 0.0
        %vm740 = vcmp.gt.f32.partialorder %v730, 0.0
        %vm741 = vcmp.gt.f32.partialorder %v732, 0.0
        %v742 = vmin.f32 %v712, 0.0
        %v743 = vmin.f32 %v714, 0.0
        %v744 = vmin.f32 %v718, 0.0
        %v745 = vmin.f32 %v720, 0.0
        %v746 = vmin.f32 %v724, 0.0
        %v747 = vmin.f32 %v726, 0.0
        %v748 = vmin.f32 %v730, 0.0
        %v749 = vmin.f32 %v732, 0.0
        %v750 = vmul.f32 %v742, 1.442695
        %v751 = vpow.pop %v750
        %v752 = vmul.f32 %v743, 1.442695
        %v753 = vpow.pop %v752
        %v754 = vmul.f32 %v744, 1.442695
        %v755 = vpow.pop %v754
        %v756 = vmul.f32 %v745, 1.442695
        %v757 = vpow.pop %v756
        %v758 = vmul.f32 %v746, 1.442695
        %v759 = vpow.pop %v758
        %v760 = vmul.f32 %v747, 1.442695
        %v761 = vpow.pop %v760
        %v762 = vmul.f32 %v748, 1.442695
        %v763 = vpow.pop %v762
        %v764 = vmul.f32 %v749, 1.442695
        %v765 = vpow.pop %v764
        %v766 = vsub.f32 %v751, 1.0
        %v767 = vsub.f32 %v753, 1.0
        %v768 = vsub.f32 %v755, 1.0
        %v769 = vsub.f32 %v757, 1.0
        %v770 = vsub.f32 %v759, 1.0
        %v771 = vsub.f32 %v761, 1.0
        %v772 = vsub.f32 %v763, 1.0
        %v773 = vsub.f32 %v765, 1.0
        %v774 = vsel %vm734, %v712, %v766
        %v775 = vsel %vm735, %v714, %v767
        %v776 = vsel %vm736, %v718, %v768
        %v777 = vsel %vm737, %v720, %v769
        %v778 = vsel %vm738, %v724, %v770
        %v779 = vsel %vm739, %v726, %v771
        %v780 = vsel %vm740, %v730, %v772
        %v781 = vsel %vm741, %v732, %v773
        %v782 = vld [vmem:[%s5] sm:$0xff]
        %v783 = vld [vmem:[%s5 + $0x8] sm:$0xff]
        %v784 = vld [vmem:[%s6] sm:$0xff]
        %v785 = vld [vmem:[%s6 + $0x8] sm:$0xff]
        %787 = vset.pattern.permute.xlu0 0
        %788 = vperm.xlu0 %787, %v784
        %v789 = vpop.permute.xlu0 %788
        %792 = vset.pattern.permute.xlu0 0
        %793 = vperm.xlu0 %792, %v785
        %v794 = vpop.permute.xlu0 %793
        %v797 = vsel %vm450, %v782, 0
        %v800 = vsel %vm450, %v783, 0
        %802 = vmatprep.subr.mxu0 %v775
        %803 = vmatpush1.msra.mxu0 %v774
        %804 = vmatprep.subr.mxu0 %v777
        %805 = vmatpush1.msra.mxu0 %v776
        %806 = vmatprep.subr.mxu0 %v779
        %807 = vmatpush1.msra.mxu0 %v778
        %808 = vmatprep.subr.mxu0 %v781
        %809 = vmatpush1.msra.mxu0 %v780
        %810 = vmatprep.subr.mxu0 0.0
        %811 = vmatpush1.msra.mxu0 0.0
        %812 = vmatprep.subr.mxu0 0.0
        %813 = vmatpush1.msra.mxu0 0.0
        %814 = vmatprep.subr.mxu0 0.0
        %815 = vmatpush1.msra.mxu0 0.0
        %816 = vmatprep.subr.mxu0 0.0
        %817 = vmatpush1.msra.mxu0 0.0
        %818 = vmatprep.subr.mxu0 0.0
        %819 = vmatpush1.msra.mxu0 0.0
        %820 = vmatprep.subr.mxu0 0.0
        %821 = vmatpush1.msra.mxu0 0.0
        %822 = vmatprep.subr.mxu0 0.0
        %823 = vmatpush1.msra.mxu0 0.0
        %824 = vmatprep.subr.mxu0 0.0
        %825 = vmatpush1.msra.mxu0 0.0
        %826 = vmatprep.subr.mxu0 0.0
        %827 = vmatpush1.msra.mxu0 0.0
        %828 = vmatprep.subr.mxu0 0.0
        %829 = vmatpush1.msra.mxu0 0.0
        %830 = vmatprep.subr.mxu0 0.0
        %831 = vmatpush1.msra.mxu0 0.0
        %832 = vmatprep.subr.mxu0 0.0
        %833 = vmatpush1.msra.mxu0 0.0
        %834 = vmatprep.subr.mxu0 0.0
        %835 = vmatpush1.msra.mxu0 0.0
        %836 = vmatprep.subr.mxu0 0.0
        %837 = vmatpush1.msra.mxu0 0.0
        %838 = vmatprep.subr.mxu0 0.0
        %839 = vmatpush1.msra.mxu0 0.0
        %840 = vmatprep.subr.mxu0 0.0
        %841 = vmatpush1.msra.mxu0 0.0
        %842 = vmatprep.subr.mxu0 0.0
        %843 = vmatpush1.msra.mxu0 0.0
        %844 = vmatprep.subr.mxu0 0.0
        %845 = vmatpush1.msra.mxu0 0.0
        %846 = vmatprep.subr.mxu0 0.0
        %847 = vmatpush1.msra.mxu0 0.0
        %848 = vmatprep.subr.mxu0 0.0
        %849 = vmatpush1.msra.mxu0 0.0
        %850 = vmatprep.subr.mxu0 0.0
        %851 = vmatpush1.msra.mxu0 0.0
        %852 = vmatprep.subr.mxu0 0.0
        %853 = vmatpush1.msra.mxu0 0.0
        %854 = vmatprep.subr.mxu0 0.0
        %855 = vmatpush1.msra.mxu0 0.0
        %856 = vmatprep.subr.mxu0 0.0
        %857 = vmatpush1.msra.mxu0 0.0
        %858 = vmatprep.subr.mxu0 0.0
        %859 = vmatpush1.msra.mxu0 0.0
        %860 = vmatprep.subr.mxu0 0.0
        %861 = vmatpush1.msra.mxu0 0.0
        %862 = vmatprep.subr.mxu0 0.0
        %863 = vmatpush1.msra.mxu0 0.0
        %864 = vmatprep.subr.mxu0 0.0
        %865 = vmatpush1.msra.mxu0 0.0
        %866 = vmatprep.mubr.f32.mxu0 0.0
        %867 = vmatmul.mubr.f32.gmra.mrb[0].mxu0 %v797
        %v868 = vpop.f32.mrb[0].mxu0
        %v869 = vadd.f32 %v789, %v868
        %v870 = vpop.f32.mrb[0].mxu0
        %v871 = vadd.f32 %v789, %v870
        %872 = vmatprep.mubr.f32.mxu0 0.0
        %873 = vmatmul.mubr.f32.gmra.mrb[0].mxu0 %v800
        %v874 = vpop.f32.mrb[0].mxu0
        %v875 = vadd.f32 %v794, %v874
        %v876 = vpop.f32.mrb[0].mxu0
        %v877 = vadd.f32 %v794, %v876
        %878 = vdwg.mxu0
        %vm879 = vcmp.gt.f32.partialorder %v869, 0.0
        %vm880 = vcmp.gt.f32.partialorder %v871, 0.0
        %vm881 = vcmp.gt.f32.partialorder %v875, 0.0
        %vm882 = vcmp.gt.f32.partialorder %v877, 0.0
        %v883 = vmul.f32 %v869, 0.01
        %v884 = vmul.f32 %v871, 0.01
        %v885 = vmul.f32 %v875, 0.01
        %v886 = vmul.f32 %v877, 0.01
        %v887 = vsel %vm879, %v869, %v883
        %v888 = vsel %vm880, %v871, %v884
        %v889 = vsel %vm881, %v875, %v885
        %v890 = vsel %vm882, %v877, %v886
        %v891 = vld [vmem:[%s7] sm:$0xff]
        %v892 = vld [vmem:[%s7 + $0x8] sm:$0xff]
        %894 = vset.pattern.permute.xlu0 0
        %895 = vperm.xlu0 %894, %v891
        %v896 = vpop.permute.xlu0 %895
        %899 = vset.pattern.permute.xlu0 0
        %900 = vperm.xlu0 %899, %v892
        %v901 = vpop.permute.xlu0 %900
        %v903 = vmul.f32 %v887, %v896
        %v904 = vmul.f32 %v888, %v896
        %v905 = vmul.f32 %v889, %v901
        %v906 = vmul.f32 %v890, %v901
        %v907 = vadd.f32 %v903, %v905
        %v908 = vrot.slane %v907, 4
        %v909 = vadd.f32 %v907, %v908
        %v910 = vrot.slane %v909, 2
        %v911 = vadd.f32 %v909, %v910
        %v912 = vrot.slane %v911, 1
        %v913 = vadd.f32 %v911, %v912
        %v914 = vadd.f32 %v904, %v906
        %v915 = vrot.slane %v914, 4
        %v916 = vadd.f32 %v914, %v915
        %v917 = vrot.slane %v916, 2
        %v918 = vadd.f32 %v916, %v917
        %v919 = vrot.slane %v918, 1
        %v920 = vadd.f32 %v918, %v919
        %v921 = vld [vmem:[#allocation2] sm:$0x1]
        %923 = vset.pattern.permute.xlu0 0
        %924 = vperm.xlu0 %923, %v921
        %v925 = vpop.permute.xlu0 %924
        %v927 = vlaneseq
        %v928 = vshrl.u32 %v927, 7
        %v929 = vsub.s32 0, %v928
        %v930 = vrot.slane %v925, %v929
        %v931 = vadd.f32 %v913, %v930
        %v932 = vadd.f32 %v920, %v930
        %v933 = vmul.f32 %v931, 0.5
        %v934 = vmul.f32 %v932, 0.5
        %v935 = vtanh.pop %v933
        %v936 = vtanh.pop %v934
        %v937 = vadd.f32 %v935, 1.0
        %v938 = vadd.f32 %v936, 1.0
        %v939 = vmul.f32 %v937, 0.5
        %v940 = vmul.f32 %v938, 0.5
        %v943 = vcombine.low %v939, %v940
        %v945 = vunpack.c.l.s4 1966171168
        %v946 = vunpack.c.0.s8 %v945
        %v947 = vlaneseq
        %v948 = vshrl.u32 %v947, 7
        %v949 = vsub.s32 %v946, %v948
        %v950 = vrot.slane %v943, %v949
        %v952 = vunpack.c.l.s4 1966171168
        %v953 = vunpack.c.0.s8 %v952
        %v954 = vlaneseq
        %v955 = vshrl.u32 %v954, 7
        %v956 = vsub.s32 %v953, %v955
        %v957 = vrot.slane %v950, %v956
        %v959 = vlaneseq
        %vm960 = vcmp.ge.s32.totalorder %v959, 0
        %vm961 = vcmp.lt.s32.totalorder %v959, 256
        %vm962 = vmand %vm960, %vm961
        %963 = vst.msk [vmem:[%s379] sm:$0x3] %vm962, %v957
        %s964 = sand.u32 %s227, 1
        %s965 = scalar_lea.sflag [#allocation5], %s964
        %s966 = sand.u32 %s227, 1
        %s967 = smul.addr %s966, 2
        %s968 = scalar_lea.vmem [#allocation4], %s967
        // Predicated region
        $region95: #{tpu_custom_call.1} parent=89 // pred_check
          %p969 = pneg %p237
        $region96: #{tpu_custom_call.1} parent=89 // pred_check_branch
          %971 = sbr.rel (%p969) target = $region98
        $region97: #{tpu_custom_call.1} parent=89 // pred_region
          %s972 = smul.u32 2, %s25
          %s974 = ssub.s32 32, 32
          %975 = vsyncadd %s965, %s974
          %s976 = smul.addr %s972, 16
          %s977 = scalar_lea.hbm %s9, %s976
          %s979 = sshll.u32 %s968, 4
          %s980 = int_to_ptr.vmem [resolvable:$true] %s979
          %982 = dma.vmem_to_hbm [thread:$0]  %s980, 32, %s977, %s965
        $region98: #{tpu_custom_call.1} parent=89 // pred_fallthru
          _
      $region90: #{tpu_custom_call.1} parent=5 // pred_fallthru
        _
      %p983 = scmp.le.s32.totalorder 2, %s20
      // Predicated region
      $region99: #{tpu_custom_call.1} parent=5 // pred_check
        %p984 = pneg %p983
      $region100: #{tpu_custom_call.1} parent=5 // pred_check_branch
        %986 = sbr.rel (%p984) target = $region102
      $region101: #{tpu_custom_call.1} parent=5 // pred_region
        %s987 = ssub.s32 %s20, 2
        // Predicated region
        $region103: #{tpu_custom_call.1} parent=101 // pred_check
          %p988 = pneg %p243
        $region104: #{tpu_custom_call.1} parent=101 // pred_check_branch
          %990 = sbr.rel (%p988) target = $region106
        $region105: #{tpu_custom_call.1} parent=101 // pred_region
          %s991 = sand.u32 %s228, 1
          %s992 = scalar_lea.sflag [#allocation5], %s991
          %s993 = sand.u32 %s228, 1
          %s994 = smul.addr %s993, 2
          %s995 = scalar_lea.vmem [#allocation4], %s994
          %996 = dma.done %s992, 32
        $region106: #{tpu_custom_call.1} parent=101 // pred_fallthru
          _
      $region102: #{tpu_custom_call.1} parent=5 // pred_fallthru
        _
    $region6: #{tpu_custom_call.1} parent=1 // loop_footer
      %s24 = sadd.s32 1, %s20
    $region7: #{tpu_custom_call.1} parent=1 // loop_footer_branch
      %19 = sbr.rel target = $region3
    $region8: #{tpu_custom_call.1} parent=1 // loop_exit
      _
    %997 = vsyncpa [#allocation5], 1
    %s998 = scalar_lea.sflag [#allocation5], 1
    %999 = vsyncpa %s998, 1

</llo_original>
